<compile_context>
chip_gen: v7x
topology: tpu7x:2x2x1
jax: 0.10.0
libtpu: 0.0.40
codegen_flags: <defaults>
</compile_context>

<pallas_src>
import functools

import jax
import jax.numpy as jnp
from jax.experimental import pallas as pl
from jax.experimental.pallas import tpu as pltpu

LANE = 128  # lane width; classifier output is zero-padded to this for dense stores


def _neuralnet_kernel(x_ref, w1_ref, b1_ref, w2_ref, b2_ref, out_ref):
    # h = relu(x @ W1^T + b1)
    #   x cast to bf16 in-kernel (no wrapper convert pass); f32 accumulation.
    x_bf = x_ref[...].astype(jnp.bfloat16)
    h = jnp.dot(x_bf, w1_ref[...], preferred_element_type=jnp.float32)
    h = jnp.maximum(h + b1_ref[...], 0.0)
    # logits = h @ W2^T + b2
    #   h kept in f32, W2 resident in f32 (tiny) -> f32 MXU matmul; the only
    #   output-side rounding is the final bf16 store.
    logits = jnp.dot(h, w2_ref[...], preferred_element_type=jnp.float32)
    out_ref[...] = (logits + b2_ref[...]).astype(out_ref.dtype)


def prepare_params(w1, b1, w2, b2):
    """One-time layout/dtype prep (hoisted out of the per-call hot path).

    nn.Linear stores weight as [out, in]; transpose once, cast W1 to bf16 once
    (MXU operand), keep W2 in f32 (resident, 64 KB, preserves accumulation
    accuracy), and zero-pad the classifier to LANE output columns once so the
    kernel's output tile is lane-dense.
    """
    d_h, d_in = w1.shape
    d_out = w2.shape[0]
    assert d_out <= LANE, "classifier wider than one lane group not supported"
    pad = LANE - d_out
    w1_t = jnp.asarray(w1.T, dtype=jnp.bfloat16)                       # [D_in, D_h]
    b1_r = jnp.asarray(b1, dtype=jnp.float32).reshape(1, d_h)          # [1, D_h]
    w2_t = jnp.asarray(w2.T, dtype=jnp.float32)                        # [D_h, D_out]
    w2_p = jnp.pad(w2_t, ((0, 0), (0, pad)))                           # [D_h, LANE]
    b2_p = jnp.pad(jnp.asarray(b2, jnp.float32).reshape(1, d_out),
                   ((0, 0), (0, pad)))                                 # [1, LANE]
    return w1_t, b1_r, w2_p, b2_p


def _round_up(v, m):
    return ((v + m - 1) // m) * m


def _pick_block(batch, block_b):
    """Grid-aware block size: >= 2 grid steps whenever the batch allows it
    (feeds both TensorCores on v7x), big blocks for large batches."""
    if batch <= 8:
        return batch                      # single block == full batch
    if batch <= 2 * block_b:
        return _round_up(pl.cdiv(batch, 2), 8)   # exactly 2 grid steps
    return block_b


@functools.partial(jax.jit, static_argnames=("block_b",))
def neuralnet_forward_padded(x, w1_t, b1_r, w2_p, b2_p, *, block_b=1024):
    """Fused inter-layer + ReLU + classifier.

    x: [B, D_in] float32. Weights must come from prepare_params().
    Returns the lane-dense padded logits buffer of shape [B, 128] (bfloat16);
    the real logits live in columns [:, :num_labels].  Returning the padded
    buffer (instead of slicing here) avoids an extra XLA pass that would
    re-read the whole output from HBM; consumers index the columns they need.
    """
    B, D_in = x.shape
    D_h = w1_t.shape[1]
    D_pad = w2_p.shape[1]  # == LANE

    blk = _pick_block(B, block_b)
    grid = (pl.cdiv(B, blk),)

    cost = pl.CostEstimate(
        flops=2 * B * D_in * D_h + 2 * B * D_h * D_pad,
        transcendentals=0,
        bytes_accessed=(B * D_in * 4            # x (f32, read in kernel)
                        + D_in * D_h * 2        # W1 bf16 (resident)
                        + D_h * 4               # b1
                        + D_h * D_pad * 4       # W2 f32 padded (resident)
                        + D_pad * 4             # b2 padded
                        + B * D_pad * 2),       # padded bf16 output write
    )

    return pl.pallas_call(
        _neuralnet_kernel,
        out_shape=jax.ShapeDtypeStruct((B, D_pad), jnp.bfloat16),
        grid_spec=pltpu.PrefetchScalarGridSpec(
            num_scalar_prefetch=0,
            grid=grid,
            in_specs=[
                pl.BlockSpec((blk, D_in), lambda i: (i, 0)),     # x (streamed, f32)
                pl.BlockSpec((D_in, D_h), lambda i: (0, 0)),     # W1^T (resident)
                pl.BlockSpec((1, D_h), lambda i: (0, 0)),        # b1
                pl.BlockSpec((D_h, D_pad), lambda i: (0, 0)),    # W2^T padded (resident)
                pl.BlockSpec((1, D_pad), lambda i: (0, 0)),      # b2 padded
            ],
            out_specs=pl.BlockSpec((blk, D_pad), lambda i: (i, 0)),
        ),
        compiler_params=pltpu.CompilerParams(
            dimension_semantics=("parallel",)),
        cost_estimate=cost,
    )(x, w1_t, b1_r, w2_p, b2_p)


def _init_params(key, num_labels, input_dim, inter_dim):
    """Deterministic parameter init (PyTorch nn.Linear-style uniform bounds)."""
    k1, k2, k3, k4 = jax.random.split(key, 4)
    bound1 = 1.0 / (input_dim ** 0.5)
    bound2 = 1.0 / (inter_dim ** 0.5)
    w1 = jax.random.uniform(k1, (inter_dim, input_dim), jnp.float32, -bound1, bound1)
    b1 = jax.random.uniform(k2, (inter_dim,), jnp.float32, -bound1, bound1)
    w2 = jax.random.uniform(k3, (num_labels, inter_dim), jnp.float32, -bound2, bound2)
    b2 = jax.random.uniform(k4, (num_labels,), jnp.float32, -bound2, bound2)
    return w1, b1, w2, b2


if __name__ == "__main__":
    # Shapes consistent with the module's forward: input_dim=32, inter_dim=128,
    # num_labels=8.  Batch=200 is small but exercises (a) a 2-step grid via the
    # grid-aware block picker (both v7x TensorCores) and (b) a partial final
    # block (200 % 104 != 0), which the review asked to be covered.
    B, D_IN, D_HID, N_LABELS = 200, 32, 128, 8

    key = jax.random.PRNGKey(0)
    k_x, k_p = jax.random.split(key)
    x = jax.random.normal(k_x, (B, D_IN), jnp.float32)
    w1, b1, w2, b2 = _init_params(k_p, N_LABELS, D_IN, D_HID)

    # One-time layout/dtype prep -- kept out of the per-call hot path.
    w1_t, b1_r, w2_p, b2_p = prepare_params(w1, b1, w2, b2)

    out_padded = neuralnet_forward_padded(x, w1_t, b1_r, w2_p, b2_p)
    out_padded = jax.block_until_ready(out_padded)

    # Consumer-side view of the real logits (outside the kernel hot path).
    logits = jnp.asarray(out_padded[:, :N_LABELS], jnp.float32)

    # Pure-JAX f32 reference of the forward semantics (bf16 x / bf16 store
    # in the kernel -> modest tolerance).
    ref = jnp.maximum(x @ w1.T + b1, 0.0) @ w2.T + b2
    assert logits.shape == (B, N_LABELS)
    assert jnp.allclose(logits, ref, atol=2e-2, rtol=2e-2), \
        float(jnp.max(jnp.abs(logits - ref)))

    # NOTE: labeled=False path -> loss is None; no LSTM -> states is None.
    # TODO(synk): BERT / LSTM / BatchNorm branches of NeuralNet are disabled in
    # this configuration (bert=None, use_lstm=False, batch_norm=False) and are
    # not reproduced here; labeled=True loss heads are likewise out of scope.
    print("KERNEL_OK")
</pallas_src>

<mosaic_0001>
module attributes {stable_mosaic.version = 11 : i64} {
  func.func @_neuralnet_kernel(%arg0: i32, %arg1: memref<104x32xf32, #tpu.memory_space<vmem>>, %arg2: memref<32x128xbf16, #tpu.memory_space<vmem>>, %arg3: memref<1x128xf32, #tpu.memory_space<vmem>>, %arg4: memref<128x128xf32, #tpu.memory_space<vmem>>, %arg5: memref<1x128xf32, #tpu.memory_space<vmem>>, %arg6: memref<104x128xbf16, #tpu.memory_space<vmem>>) attributes {dimension_semantics = [#tpu.dimension_semantics<parallel>], iteration_bounds = array<i64: 2>, scalar_prefetch = 0 : i64, scratch_operands = 0 : i64, tpu.core_type = #tpu.core_type<tc>, window_params = [{transform_indices = @transform_0, window_bounds = array<i64: 104, 32>}, {pipeline_mode = #tpu.pipeline_mode<synchronous>, transform_indices = @transform_1, window_bounds = array<i64: 32, 128>}, {pipeline_mode = #tpu.pipeline_mode<synchronous>, transform_indices = @transform_2, window_bounds = array<i64: 1, 128>}, {pipeline_mode = #tpu.pipeline_mode<synchronous>, transform_indices = @transform_3, window_bounds = array<i64: 128, 128>}, {pipeline_mode = #tpu.pipeline_mode<synchronous>, transform_indices = @transform_4, window_bounds = array<i64: 1, 128>}, {transform_indices = @transform_5, window_bounds = array<i64: 104, 128>}]} {
    %c0 = arith.constant 0 : index
    %c0_0 = arith.constant 0 : index
    %0 = vector.load %arg1[%c0, %c0_0] : memref<104x32xf32, #tpu.memory_space<vmem>>, vector<104x32xf32>
    %1 = arith.truncf %0 : vector<104x32xf32> to vector<104x32xbf16>
    %c0_1 = arith.constant 0 : index
    %c0_2 = arith.constant 0 : index
    %2 = vector.load %arg2[%c0_1, %c0_2] : memref<32x128xbf16, #tpu.memory_space<vmem>>, vector<32x128xbf16>
    %cst = arith.constant dense<0.000000e+00> : vector<104x128xf32>
    %3 = tpu.matmul %1, %2, %cst {dimension_numbers = #tpu.dot_dimension_numbers<[1], [0], [0], [1], [0, 0, 1, 1], [], []>} : vector<104x32xbf16>, vector<32x128xbf16>, vector<104x128xf32> -> vector<104x128xf32>
    %c0_3 = arith.constant 0 : index
    %c0_4 = arith.constant 0 : index
    %4 = vector.load %arg3[%c0_3, %c0_4] : memref<1x128xf32, #tpu.memory_space<vmem>>, vector<1x128xf32>
    %5 = vector.broadcast %4 : vector<1x128xf32> to vector<104x128xf32>
    %6 = arith.addf %3, %5 : vector<104x128xf32>
    %cst_5 = arith.constant 0.000000e+00 : f32
    %7 = vector.broadcast %cst_5 : f32 to vector<104x128xf32>
    %8 = arith.maximumf %6, %7 : vector<104x128xf32>
    %c0_6 = arith.constant 0 : index
    %c0_7 = arith.constant 0 : index
    %9 = vector.load %arg4[%c0_6, %c0_7] : memref<128x128xf32, #tpu.memory_space<vmem>>, vector<128x128xf32>
    %cst_8 = arith.constant dense<0.000000e+00> : vector<104x128xf32>
    %10 = tpu.matmul %8, %9, %cst_8 {dimension_numbers = #tpu.dot_dimension_numbers<[1], [0], [0], [1], [0, 0, 1, 1], [], []>} : vector<104x128xf32>, vector<128x128xf32>, vector<104x128xf32> -> vector<104x128xf32>
    %c0_9 = arith.constant 0 : index
    %c0_10 = arith.constant 0 : index
    %11 = vector.load %arg5[%c0_9, %c0_10] : memref<1x128xf32, #tpu.memory_space<vmem>>, vector<1x128xf32>
    %12 = vector.broadcast %11 : vector<1x128xf32> to vector<104x128xf32>
    %13 = arith.addf %10, %12 : vector<104x128xf32>
    %14 = arith.truncf %13 : vector<104x128xf32> to vector<104x128xbf16>
    %c0_11 = arith.constant 0 : index
    %c0_12 = arith.constant 0 : index
    %15 = vector.load %arg6[%c0_11, %c0_12] : memref<104x128xbf16, #tpu.memory_space<vmem>>, vector<104x128xbf16>
    tpu.vector_store %arg6[%c0_11, %c0_12], %14 {strides = array<i32>} : memref<104x128xbf16, #tpu.memory_space<vmem>>, vector<104x128xbf16>,
    return
  }
  func.func @transform_0(%arg0: i32) -> (i32, i32) {
    %c0_i32 = arith.constant 0 : i32
    %c0_i32_0 = arith.constant 0 : i32
    return %arg0, %c0_i32 : i32, i32
  }
  func.func @transform_1(%arg0: i32) -> (i32, i32) {
    %c0_i32 = arith.constant 0 : i32
    %c0_i32_0 = arith.constant 0 : i32
    %c0_i32_1 = arith.constant 0 : i32
    return %c0_i32, %c0_i32_0 : i32, i32
  }
  func.func @transform_2(%arg0: i32) -> (i32, i32) {
    %c0_i32 = arith.constant 0 : i32
    %c0_i32_0 = arith.constant 0 : i32
    %c0_i32_1 = arith.constant 0 : i32
    return %c0_i32, %c0_i32_0 : i32, i32
  }
  func.func @transform_3(%arg0: i32) -> (i32, i32) {
    %c0_i32 = arith.constant 0 : i32
    %c0_i32_0 = arith.constant 0 : i32
    %c0_i32_1 = arith.constant 0 : i32
    return %c0_i32, %c0_i32_0 : i32, i32
  }
  func.func @transform_4(%arg0: i32) -> (i32, i32) {
    %c0_i32 = arith.constant 0 : i32
    %c0_i32_0 = arith.constant 0 : i32
    %c0_i32_1 = arith.constant 0 : i32
    return %c0_i32, %c0_i32_0 : i32, i32
  }
  func.func @transform_5(%arg0: i32) -> (i32, i32) {
    %c0_i32 = arith.constant 0 : i32
    %c0_i32_0 = arith.constant 0 : i32
    return %arg0, %c0_i32 : i32, i32
  }
}

</mosaic_0001>

<llo_original>
// kernel: neuralnet_forward_padded.1
$region0: #{neuralnet_forward_padded.1}
  #allocation0 [shape = 'u32[]', space=smem, size = 0x4, offset = 0x4, fixed_abs, tag = 'smem constant byte address 0x4 - core index']
  #allocation1 [shape = 'u32[144,128]{1,0:T(1,128)}', space=vmem, size = 0x12000, scoped, tag = 'internal scratch']
  %s0 = inlined_call_operand.vmem [shape: f32[200,32], index: 0, kind: input, shape index: {}]
  %s1 = inlined_call_operand.vmem [shape: bf16[32,128], index: 1, kind: input, shape index: {}]
  %s2 = inlined_call_operand.vmem [shape: f32[1,128], index: 2, kind: input, shape index: {}]
  %s3 = inlined_call_operand.vmem [shape: f32[128,128], index: 3, kind: input, shape index: {}]
  %s4 = inlined_call_operand.vmem [shape: f32[1,128], index: 4, kind: input, shape index: {}]
  %s5 = inlined_call_operand.hbm [shape: bf16[200,128], index: 5, kind: output, shape index: {}]
  %s6 = sld [smem:[#allocation0]]
  $region53: #{neuralnet_forward_padded.1} parent=0
    _
  %s8 = ssub.s32 1, %s6
  %s9 = scalar_select 0, %s8, %s6
  $region1: #{neuralnet_forward_padded.1} parent=0
    #allocation2 [shape = 'u8[53248]{0}', space=vmem, size = 0xd000, scoped, tag = 'output window, operand 0']
    #allocation3 [shape = 's32[2]{0}', space=sflag, size = 0x8, scoped, tag = 'scoped memory for neuralnet_forward_padded.1']
    %10 = vsyncpa [#allocation3], 0
    %s11 = scalar_lea.sflag [#allocation3], 1
    %12 = vsyncpa %s11, 0
    loop: start=0, step=1, limit=4
    $region2: #{neuralnet_forward_padded.1} parent=1 // loop_pre_header
      _
    $region3: #{neuralnet_forward_padded.1} parent=1 // loop_header
      %s14 = sphi 0, %s18
      %p15 = scmp.ge.s32.totalorder %s14, 4
      %s24 = sphi 0, %s26
      %s27 = sphi 0, %s24
      %s28 = sphi 0, %s27
      %s44 = sphi 0, %s28
      %s48 = sphi 0, %s48
      %s50 = sphi 0, %s48
      %s51 = sphi 0, %s50
      %s65 = sphi 0, %s51
      %s69 = sphi 0, %s69
      %s71 = sphi 0, %s69
      %s72 = sphi 0, %s71
      %s86 = sphi 0, %s72
      %s90 = sphi 0, %s90
      %s92 = sphi 0, %s90
      %s93 = sphi 0, %s92
      %s107 = sphi 0, %s93
      %s111 = sphi 0, %s111
      %s113 = sphi 0, %s111
      %s114 = sphi 0, %s113
      %s128 = sphi 0, %s114
      %s134 = sphi 0, %s136
      %s137 = sphi 0, %s134
      %s138 = sphi 0, %s137
      %s154 = sphi 0, %s138
    $region4: #{neuralnet_forward_padded.1} parent=1 // loop_header_branch
      %17 = sbr.rel (%p15) target = $region8
    $region5: #{neuralnet_forward_padded.1} parent=1 // loop_body
      %s19 = ssub.s32 %s14, 1
      %s20 = ssub.s32 %s14, 2
      %s21 = sadd.s32 %s14, 1
      %s22 = ssub.s32 %s14, %s21
      %p23 = scmp.eq.s32.totalorder %s22, 0
      %s25 = sadd.s32 %s24, 1
      %s26 = scalar_select %p23, %s24, %s25
      %p29 = pneg %p23
      %p30 = scmp.eq.s32.totalorder %s14, 1
      %p31 = por %p29, %p30
      %p32 = scmp.ne.s32.totalorder %s24, %s27
      %p33 = scmp.eq.s32.totalorder %s14, 0
      %p34 = por %p32, %p33
      %p35 = scmp.ne.s32.totalorder %s24, %s27
      %p36 = scmp.eq.s32.totalorder %s19, 1
      %p37 = por %p35, %p36
      %p38 = scmp.ne.s32.totalorder %s27, %s28
      %p39 = scmp.eq.s32.totalorder %s19, 0
      %p40 = por %p38, %p39
      %p41 = scmp.ne.s32.totalorder %s27, %s28
      %p42 = scmp.eq.s32.totalorder %s20, 1
      %p43 = por %p41, %p42
      %p45 = scmp.ne.s32.totalorder %s28, %s44
      %p46 = scmp.eq.s32.totalorder %s20, 0
      %p47 = por %p45, %p46
      %s49 = sadd.s32 %s48, 1
      %p52 = scmp.eq.s32.totalorder %s14, 1
      %p53 = scmp.ne.s32.totalorder %s48, %s50
      %p54 = scmp.eq.s32.totalorder %s14, 0
      %p55 = por %p53, %p54
      %p56 = scmp.ne.s32.totalorder %s48, %s50
      %p57 = scmp.eq.s32.totalorder %s19, 1
      %p58 = por %p56, %p57
      %p59 = scmp.ne.s32.totalorder %s50, %s51
      %p60 = scmp.eq.s32.totalorder %s19, 0
      %p61 = por %p59, %p60
      %p62 = scmp.ne.s32.totalorder %s50, %s51
      %p63 = scmp.eq.s32.totalorder %s20, 1
      %p64 = por %p62, %p63
      %p66 = scmp.ne.s32.totalorder %s51, %s65
      %p67 = scmp.eq.s32.totalorder %s20, 0
      %p68 = por %p66, %p67
      %s70 = sadd.s32 %s69, 1
      %p73 = scmp.eq.s32.totalorder %s14, 1
      %p74 = scmp.ne.s32.totalorder %s69, %s71
      %p75 = scmp.eq.s32.totalorder %s14, 0
      %p76 = por %p74, %p75
      %p77 = scmp.ne.s32.totalorder %s69, %s71
      %p78 = scmp.eq.s32.totalorder %s19, 1
      %p79 = por %p77, %p78
      %p80 = scmp.ne.s32.totalorder %s71, %s72
      %p81 = scmp.eq.s32.totalorder %s19, 0
      %p82 = por %p80, %p81
      %p83 = scmp.ne.s32.totalorder %s71, %s72
      %p84 = scmp.eq.s32.totalorder %s20, 1
      %p85 = por %p83, %p84
      %p87 = scmp.ne.s32.totalorder %s72, %s86
      %p88 = scmp.eq.s32.totalorder %s20, 0
      %p89 = por %p87, %p88
      %s91 = sadd.s32 %s90, 1
      %p94 = scmp.eq.s32.totalorder %s14, 1
      %p95 = scmp.ne.s32.totalorder %s90, %s92
      %p96 = scmp.eq.s32.totalorder %s14, 0
      %p97 = por %p95, %p96
      %p98 = scmp.ne.s32.totalorder %s90, %s92
      %p99 = scmp.eq.s32.totalorder %s19, 1
      %p100 = por %p98, %p99
      %p101 = scmp.ne.s32.totalorder %s92, %s93
      %p102 = scmp.eq.s32.totalorder %s19, 0
      %p103 = por %p101, %p102
      %p104 = scmp.ne.s32.totalorder %s92, %s93
      %p105 = scmp.eq.s32.totalorder %s20, 1
      %p106 = por %p104, %p105
      %p108 = scmp.ne.s32.totalorder %s93, %s107
      %p109 = scmp.eq.s32.totalorder %s20, 0
      %p110 = por %p108, %p109
      %s112 = sadd.s32 %s111, 1
      %p115 = scmp.eq.s32.totalorder %s14, 1
      %p116 = scmp.ne.s32.totalorder %s111, %s113
      %p117 = scmp.eq.s32.totalorder %s14, 0
      %p118 = por %p116, %p117
      %p119 = scmp.ne.s32.totalorder %s111, %s113
      %p120 = scmp.eq.s32.totalorder %s19, 1
      %p121 = por %p119, %p120
      %p122 = scmp.ne.s32.totalorder %s113, %s114
      %p123 = scmp.eq.s32.totalorder %s19, 0
      %p124 = por %p122, %p123
      %p125 = scmp.ne.s32.totalorder %s113, %s114
      %p126 = scmp.eq.s32.totalorder %s20, 1
      %p127 = por %p125, %p126
      %p129 = scmp.ne.s32.totalorder %s114, %s128
      %p130 = scmp.eq.s32.totalorder %s20, 0
      %p131 = por %p129, %p130
      %s132 = ssub.s32 %s14, %s21
      %p133 = scmp.eq.s32.totalorder %s132, 0
      %s135 = sadd.s32 %s134, 1
      %s136 = scalar_select %p133, %s134, %s135
      %p139 = pneg %p133
      %p140 = scmp.eq.s32.totalorder %s14, 1
      %p141 = por %p139, %p140
      %p142 = scmp.ne.s32.totalorder %s134, %s137
      %p143 = scmp.eq.s32.totalorder %s14, 0
      %p144 = por %p142, %p143
      %p145 = scmp.ne.s32.totalorder %s134, %s137
      %p146 = scmp.eq.s32.totalorder %s19, 1
      %p147 = por %p145, %p146
      %p148 = scmp.ne.s32.totalorder %s137, %s138
      %p149 = scmp.eq.s32.totalorder %s19, 0
      %p150 = por %p148, %p149
      %p151 = scmp.ne.s32.totalorder %s137, %s138
      %p152 = scmp.eq.s32.totalorder %s20, 1
      %p153 = por %p151, %p152
      %p155 = scmp.ne.s32.totalorder %s138, %s154
      %p156 = scmp.eq.s32.totalorder %s20, 0
      %p157 = por %p155, %p156
      %p158 = scmp.le.s32.totalorder 1, %s14
      %p159 = scmp.lt.s32.totalorder %s14, 3
      %p160 = pnand %p158, %p159
      %p161 = pneg %p160
      // Predicated region
      $region9: #{neuralnet_forward_padded.1} parent=5 // pred_check
        _
      $region10: #{neuralnet_forward_padded.1} parent=5 // pred_check_branch
        %163 = sbr.rel (%p160) target = $region12
      $region11: #{neuralnet_forward_padded.1} parent=5 // pred_region
        %s164 = ssub.s32 %s14, 1
        // Predicated region
        $region13: #{neuralnet_forward_padded.1} parent=11 // pred_check
          %p165 = pneg %p61
        $region14: #{neuralnet_forward_padded.1} parent=11 // pred_check_branch
          %167 = sbr.rel (%p165) target = $region16
        $region15: #{neuralnet_forward_padded.1} parent=11 // pred_region
          _
        $region16: #{neuralnet_forward_padded.1} parent=11 // pred_fallthru
          _
        // Predicated region
        $region17: #{neuralnet_forward_padded.1} parent=11 // pred_check
          %p168 = pneg %p82
        $region18: #{neuralnet_forward_padded.1} parent=11 // pred_check_branch
          %170 = sbr.rel (%p168) target = $region20
        $region19: #{neuralnet_forward_padded.1} parent=11 // pred_region
          _
        $region20: #{neuralnet_forward_padded.1} parent=11 // pred_fallthru
          _
        // Predicated region
        $region21: #{neuralnet_forward_padded.1} parent=11 // pred_check
          %p171 = pneg %p103
        $region22: #{neuralnet_forward_padded.1} parent=11 // pred_check_branch
          %173 = sbr.rel (%p171) target = $region24
        $region23: #{neuralnet_forward_padded.1} parent=11 // pred_region
          _
        $region24: #{neuralnet_forward_padded.1} parent=11 // pred_fallthru
          _
        // Predicated region
        $region25: #{neuralnet_forward_padded.1} parent=11 // pred_check
          %p174 = pneg %p124
        $region26: #{neuralnet_forward_padded.1} parent=11 // pred_check_branch
          %176 = sbr.rel (%p174) target = $region28
        $region27: #{neuralnet_forward_padded.1} parent=11 // pred_region
          _
        $region28: #{neuralnet_forward_padded.1} parent=11 // pred_fallthru
          _
      $region12: #{neuralnet_forward_padded.1} parent=5 // pred_fallthru
        _
      %p177 = scmp.lt.s32.totalorder %s14, 2
      // Predicated region
      $region29: #{neuralnet_forward_padded.1} parent=5 // pred_check
        %p178 = pneg %p177
      $region30: #{neuralnet_forward_padded.1} parent=5 // pred_check_branch
        %180 = sbr.rel (%p178) target = $region32
      $region31: #{neuralnet_forward_padded.1} parent=5 // pred_region
        // Predicated region
        $region33: #{neuralnet_forward_padded.1} parent=31 // pred_check
          %p181 = pneg %p34
        $region34: #{neuralnet_forward_padded.1} parent=31 // pred_check_branch
          %183 = sbr.rel (%p181) target = $region36
        $region35: #{neuralnet_forward_padded.1} parent=31 // pred_region
          %s184 = smul.u32 13, %s14
          %s185 = ssub.s32 25, %s184
          %p186 = scmp.lt.s32.totalorder %s185, 13
          %s187 = scalar_select %p186, %s185, 13
          %s188 = smul.u32 128, %s187
          %p189 = scmp.lt.s32.totalorder %s184, 24
          %s190 = scalar_select %p189, %s184, 24
          %s191 = smul.addr %s190, 8
          %s192 = scalar_lea.vmem %s0, %s191
          %s193 = smul.u32 13, %s14
          %s194 = ssub.s32 25, %s193
          %p195 = scmp.lt.s32.totalorder %s194, 13
          %s196 = scalar_select %p195, %s194, 13
          %s197 = smul.u32 128, %s196
        $region36: #{neuralnet_forward_padded.1} parent=31 // pred_fallthru
          _
      $region32: #{neuralnet_forward_padded.1} parent=5 // pred_fallthru
        _
      %p198 = scmp.le.s32.totalorder 1, %s14
      %p199 = scmp.lt.s32.totalorder %s14, 3
      %p200 = pnand %p198, %p199
      %p201 = pneg %p200
      // Predicated region
      $region37: #{neuralnet_forward_padded.1} parent=5 // pred_check
        _
      $region38: #{neuralnet_forward_padded.1} parent=5 // pred_check_branch
        %203 = sbr.rel (%p200) target = $region40
      $region39: #{neuralnet_forward_padded.1} parent=5 // pred_region
        %s204 = ssub.s32 %s14, 1
        %s205 = smul.u32 13, %s19
        %s206 = ssub.s32 25, %s205
        %p207 = scmp.lt.s32.totalorder %s206, 13
        %s208 = scalar_select %p207, %s206, 13
        %s209 = smul.u32 128, %s208
        %p210 = scmp.lt.s32.totalorder %s205, 24
        %s211 = scalar_select %p210, %s205, 24
        %s212 = smul.addr %s211, 8
        %s213 = scalar_lea.vmem %s0, %s212
        %p214 = pneg %p40
        %p215 = pneg %p37
        %p216 = pneg %p61
        %p217 = pneg %p58
        %p218 = pneg %p82
        %p219 = pneg %p79
        %p220 = pneg %p103
        %p221 = pneg %p100
        %p222 = pneg %p124
        %p223 = pneg %p121
        %p224 = pneg %p150
        %p225 = pneg %p147
        %s226 = sand.u32 %s137, 1
        %s227 = scalar_lea.sflag [#allocation3], %s226
        %s228 = sand.u32 %s137, 1
        %s229 = smul.addr %s228, 52
        %s230 = scalar_lea.vmem [#allocation2], %s229
        %s231 = smul.u32 13, %s19
        %s232 = ssub.s32 25, %s231
        %p233 = scmp.lt.s32.totalorder %s232, 13
        %s234 = scalar_select %p233, %s232, 13
        %s235 = smul.u32 128, %s234
        %p236 = scmp.lt.s32.totalorder %s231, 24
        %s237 = scalar_select %p236, %s231, 24
        %s238 = smul.addr %s237, 8
        %s239 = scalar_lea.vmem %s0, %s238
        %s240 = smul.u32 13, %s19
        %s241 = ssub.s32 25, %s240
        %p242 = scmp.lt.s32.totalorder %s241, 13
        %s243 = scalar_select %p242, %s241, 13
        %s244 = smul.u32 128, %s243
        %s245 = smul.u32 13, %s19
        %s246 = ssub.s32 25, %s245
        %p247 = scmp.lt.s32.totalorder %s246, 13
        %s248 = scalar_select %p247, %s246, 13
        %s249 = smul.u32 64, %s248
        %v251 = vld [vmem:[%s239] sm:$0xff]
        %v252 = vld [vmem:[%s239 + $0x8] sm:$0xff]
        %v253 = vld [vmem:[%s239 + $0x10] sm:$0xff]
        %v254 = vld [vmem:[%s239 + $0x18] sm:$0xff]
        %v255 = vld [vmem:[%s239 + $0x20] sm:$0xff]
        %v256 = vld [vmem:[%s239 + $0x28] sm:$0xff]
        %v257 = vld [vmem:[%s239 + $0x30] sm:$0xff]
        %v258 = vld [vmem:[%s239 + $0x38] sm:$0xff]
        %v259 = vld [vmem:[%s239 + $0x40] sm:$0xff]
        %v260 = vld [vmem:[%s239 + $0x48] sm:$0xff]
        %v261 = vld [vmem:[%s239 + $0x50] sm:$0xff]
        %v262 = vld [vmem:[%s239 + $0x58] sm:$0xff]
        %v263 = vld [vmem:[%s239 + $0x60] sm:$0xff]
        %v264 = vpack.c.bf16 %v252, %v251
        %v265 = vpack.c.bf16 %v254, %v253
        %v266 = vpack.c.bf16 %v256, %v255
        %v267 = vpack.c.bf16 %v258, %v257
        %v268 = vpack.c.bf16 %v260, %v259
        %v269 = vpack.c.bf16 %v262, %v261
        %v270 = vpack.c.bf16 %v263, %v263
        %v271 = vld [vmem:[%s1] sm:$0xf]
        %v272 = vld [vmem:[%s1 + $0x4] sm:$0xf]
        %v273 = vld [vmem:[%s1 + $0x8] sm:$0xf]
        %v274 = vld [vmem:[%s1 + $0xc] sm:$0xf]
        %v275 = vld [vmem:[%s2] sm:$0x1]
        %v277 = vlaneseq
        %v278 = vshrl.u32 %v277, 7
        %v279 = vsub.s32 0, %v278
        %v280 = vrot.slane %v275, %v279
        %v286 = vunpack.c.l.b16 %v271
        %v287 = vunpack.c.l.b16 %v272
        %v288 = vunpack.c.l.b16 %v273
        %v289 = vunpack.c.l.b16 %v274
        %v290 = vpack.c.b16 %v287, %v286
        %v291 = vpack.c.b16 %v289, %v288
        %vm294 = vcmask 261120
        %v296 = vsel %vm294, %v264, 0
        %v299 = vsel %vm294, %v265, 0
        %v302 = vsel %vm294, %v266, 0
        %v305 = vsel %vm294, %v267, 0
        %v308 = vsel %vm294, %v268, 0
        %v311 = vsel %vm294, %v269, 0
        %v314 = vsel %vm294, %v270, 0
        %316 = vmatprep.subr.bf16.mxu0 0
        %317 = vmatpush1.bf16.msra.mxu0 %v290
        %318 = vmatprep.subr.bf16.mxu0 0
        %319 = vmatpush1.bf16.msra.mxu0 %v291
        %320 = vmatprep.subr.bf16.mxu0 0
        %321 = vmatpush1.bf16.msra.mxu0 0
        %322 = vmatprep.subr.bf16.mxu0 0
        %323 = vmatpush1.bf16.msra.mxu0 0
        %324 = vmatprep.subr.bf16.mxu0 0
        %325 = vmatpush1.bf16.msra.mxu0 0
        %326 = vmatprep.subr.bf16.mxu0 0
        %327 = vmatpush1.bf16.msra.mxu0 0
        %328 = vmatprep.subr.bf16.mxu0 0
        %329 = vmatpush1.bf16.msra.mxu0 0
        %330 = vmatprep.subr.bf16.mxu0 0
        %331 = vmatpush1.bf16.msra.mxu0 0
        %332 = vmatprep.subr.bf16.mxu0 0
        %333 = vmatpush1.bf16.msra.mxu0 0
        %334 = vmatprep.subr.bf16.mxu0 0
        %335 = vmatpush1.bf16.msra.mxu0 0
        %336 = vmatprep.subr.bf16.mxu0 0
        %337 = vmatpush1.bf16.msra.mxu0 0
        %338 = vmatprep.subr.bf16.mxu0 0
        %339 = vmatpush1.bf16.msra.mxu0 0
        %340 = vmatprep.subr.bf16.mxu0 0
        %341 = vmatpush1.bf16.msra.mxu0 0
        %342 = vmatprep.subr.bf16.mxu0 0
        %343 = vmatpush1.bf16.msra.mxu0 0
        %344 = vmatprep.subr.bf16.mxu0 0
        %345 = vmatpush1.bf16.msra.mxu0 0
        %346 = vmatprep.subr.bf16.mxu0 0
        %347 = vmatpush1.bf16.msra.mxu0 0
        %348 = vmatprep.mubr.bf16.mxu0 0
        %349 = vmatmul.mubr.bf16.gmra.mrb[0].mxu0 %v296
        %v350 = vpop.f32.mrb[0].mxu0
        %v351 = vadd.f32 %v280, %v350
        %v352 = vpop.f32.mrb[0].mxu0
        %v353 = vpop.f32.mrb[0].mxu0
        %v354 = vadd.f32 %v280, %v353
        %v355 = vpop.f32.mrb[0].mxu0
        %356 = vmatprep.mubr.bf16.mxu0 0
        %357 = vmatmul.mubr.bf16.gmra.mrb[0].mxu0 %v299
        %v358 = vpop.f32.mrb[0].mxu0
        %v359 = vadd.f32 %v280, %v358
        %v360 = vpop.f32.mrb[0].mxu0
        %v361 = vpop.f32.mrb[0].mxu0
        %v362 = vadd.f32 %v280, %v361
        %v363 = vpop.f32.mrb[0].mxu0
        %364 = vmatprep.mubr.bf16.mxu0 0
        %365 = vmatmul.mubr.bf16.gmra.mrb[0].mxu0 %v302
        %v366 = vpop.f32.mrb[0].mxu0
        %v367 = vadd.f32 %v280, %v366
        %v368 = vpop.f32.mrb[0].mxu0
        %v369 = vpop.f32.mrb[0].mxu0
        %v370 = vadd.f32 %v280, %v369
        %v371 = vpop.f32.mrb[0].mxu0
        %372 = vmatprep.mubr.bf16.mxu0 0
        %373 = vmatmul.mubr.bf16.gmra.mrb[0].mxu0 %v305
        %v374 = vpop.f32.mrb[0].mxu0
        %v375 = vadd.f32 %v280, %v374
        %v376 = vpop.f32.mrb[0].mxu0
        %v377 = vpop.f32.mrb[0].mxu0
        %v378 = vadd.f32 %v280, %v377
        %v379 = vpop.f32.mrb[0].mxu0
        %380 = vmatprep.mubr.bf16.mxu0 0
        %381 = vmatmul.mubr.bf16.gmra.mrb[0].mxu0 %v308
        %v382 = vpop.f32.mrb[0].mxu0
        %v383 = vadd.f32 %v280, %v382
        %v384 = vpop.f32.mrb[0].mxu0
        %v385 = vpop.f32.mrb[0].mxu0
        %v386 = vadd.f32 %v280, %v385
        %v387 = vpop.f32.mrb[0].mxu0
        %388 = vmatprep.mubr.bf16.mxu0 0
        %389 = vmatmul.mubr.bf16.gmra.mrb[0].mxu0 %v311
        %v390 = vpop.f32.mrb[0].mxu0
        %v391 = vadd.f32 %v280, %v390
        %v392 = vpop.f32.mrb[0].mxu0
        %v393 = vpop.f32.mrb[0].mxu0
        %v394 = vadd.f32 %v280, %v393
        %v395 = vpop.f32.mrb[0].mxu0
        %396 = vmatprep.mubr.bf16.mxu0 0
        %397 = vmatmul.mubr.bf16.gmra.mrb[0].mxu0 %v314
        %v398 = vpop.f32.mrb[0].mxu0
        %v399 = vadd.f32 %v280, %v398
        %v400 = vpop.f32.mrb[0].mxu0
        %v401 = vpop.f32.mrb[0].mxu0
        %v402 = vpop.f32.mrb[0].mxu0
        %403 = vdwg.mxu0
        %v404 = vmax.f32 %v351, 0.0
        %v405 = vmax.f32 %v354, 0.0
        %v406 = vmax.f32 %v359, 0.0
        %v407 = vmax.f32 %v362, 0.0
        %v408 = vmax.f32 %v367, 0.0
        %v409 = vmax.f32 %v370, 0.0
        %v410 = vmax.f32 %v375, 0.0
        %v411 = vmax.f32 %v378, 0.0
        %v412 = vmax.f32 %v383, 0.0
        %v413 = vmax.f32 %v386, 0.0
        %v414 = vmax.f32 %v391, 0.0
        %v415 = vmax.f32 %v394, 0.0
        %v416 = vmax.f32 %v399, 0.0
        %v417 = vld [vmem:[%s3] sm:$0xff]
        %v418 = vld [vmem:[%s3 + $0x8] sm:$0xff]
        %v419 = vld [vmem:[%s3 + $0x10] sm:$0xff]
        %v420 = vld [vmem:[%s3 + $0x18] sm:$0xff]
        %v421 = vld [vmem:[%s3 + $0x20] sm:$0xff]
        %v422 = vld [vmem:[%s3 + $0x28] sm:$0xff]
        %v423 = vld [vmem:[%s3 + $0x30] sm:$0xff]
        %v424 = vld [vmem:[%s3 + $0x38] sm:$0xff]
        %v425 = vld [vmem:[%s3 + $0x40] sm:$0xff]
        %v426 = vld [vmem:[%s3 + $0x48] sm:$0xff]
        %v427 = vld [vmem:[%s3 + $0x50] sm:$0xff]
        %v428 = vld [vmem:[%s3 + $0x58] sm:$0xff]
        %v429 = vld [vmem:[%s3 + $0x60] sm:$0xff]
        %v430 = vld [vmem:[%s3 + $0x68] sm:$0xff]
        %v431 = vld [vmem:[%s3 + $0x70] sm:$0xff]
        %v432 = vld [vmem:[%s3 + $0x78] sm:$0xff]
        %v433 = vld [vmem:[%s4] sm:$0x1]
        %v435 = vlaneseq
        %v436 = vshrl.u32 %v435, 7
        %v437 = vsub.s32 0, %v436
        %v438 = vrot.slane %v433, %v437
        %440 = vmatprep.subr.mxu0 0.0
        %441 = vmatpush1.msra.mxu0 %v417
        %442 = vmatprep.subr.mxu0 0.0
        %443 = vmatpush1.msra.mxu0 %v418
        %444 = vmatprep.subr.mxu0 0.0
        %445 = vmatpush1.msra.mxu0 %v419
        %446 = vmatprep.subr.mxu0 0.0
        %447 = vmatpush1.msra.mxu0 %v420
        %448 = vmatprep.subr.mxu0 0.0
        %449 = vmatpush1.msra.mxu0 %v421
        %450 = vmatprep.subr.mxu0 0.0
        %451 = vmatpush1.msra.mxu0 %v422
        %452 = vmatprep.subr.mxu0 0.0
        %453 = vmatpush1.msra.mxu0 %v423
        %454 = vmatprep.subr.mxu0 0.0
        %455 = vmatpush1.msra.mxu0 %v424
        %456 = vmatprep.subr.mxu0 0.0
        %457 = vmatpush1.msra.mxu0 %v425
        %458 = vmatprep.subr.mxu0 0.0
        %459 = vmatpush1.msra.mxu0 %v426
        %460 = vmatprep.subr.mxu0 0.0
        %461 = vmatpush1.msra.mxu0 %v427
        %462 = vmatprep.subr.mxu0 0.0
        %463 = vmatpush1.msra.mxu0 %v428
        %464 = vmatprep.subr.mxu0 0.0
        %465 = vmatpush1.msra.mxu0 %v429
        %466 = vmatprep.subr.mxu0 0.0
        %467 = vmatpush1.msra.mxu0 %v430
        %468 = vmatprep.subr.mxu0 0.0
        %469 = vmatpush1.msra.mxu0 %v431
        %470 = vmatprep.subr.mxu0 0.0
        %471 = vmatpush1.msra.mxu0 %v432
        %472 = vmatprep.subr.mxu0 0.0
        %473 = vmatpush1.msra.mxu0 0.0
        %474 = vmatprep.subr.mxu0 0.0
        %475 = vmatpush1.msra.mxu0 0.0
        %476 = vmatprep.subr.mxu0 0.0
        %477 = vmatpush1.msra.mxu0 0.0
        %478 = vmatprep.subr.mxu0 0.0
        %479 = vmatpush1.msra.mxu0 0.0
        %480 = vmatprep.subr.mxu0 0.0
        %481 = vmatpush1.msra.mxu0 0.0
        %482 = vmatprep.subr.mxu0 0.0
        %483 = vmatpush1.msra.mxu0 0.0
        %484 = vmatprep.subr.mxu0 0.0
        %485 = vmatpush1.msra.mxu0 0.0
        %486 = vmatprep.subr.mxu0 0.0
        %487 = vmatpush1.msra.mxu0 0.0
        %488 = vmatprep.subr.mxu0 0.0
        %489 = vmatpush1.msra.mxu0 0.0
        %490 = vmatprep.subr.mxu0 0.0
        %491 = vmatpush1.msra.mxu0 0.0
        %492 = vmatprep.subr.mxu0 0.0
        %493 = vmatpush1.msra.mxu0 0.0
        %494 = vmatprep.subr.mxu0 0.0
        %495 = vmatpush1.msra.mxu0 0.0
        %496 = vmatprep.subr.mxu0 0.0
        %497 = vmatpush1.msra.mxu0 0.0
        %498 = vmatprep.subr.mxu0 0.0
        %499 = vmatpush1.msra.mxu0 0.0
        %500 = vmatprep.subr.mxu0 0.0
        %501 = vmatpush1.msra.mxu0 0.0
        %502 = vmatprep.subr.mxu0 0.0
        %503 = vmatpush1.msra.mxu0 0.0
        %504 = vmatprep.mubr.f32.mxu0 0.0
        %505 = vmatmul.mubr.f32.gmra.mrb[0].mxu0 %v404
        %v506 = vpop.f32.mrb[0].mxu0
        %v507 = vadd.f32 %v438, %v506
        %v508 = vpop.f32.mrb[0].mxu0
        %509 = vmatprep.mubr.f32.mxu0 0.0
        %510 = vmatmul.mubr.f32.gmra.mrb[0].mxu0 %v405
        %v511 = vpop.f32.mrb[0].mxu0
        %v512 = vadd.f32 %v438, %v511
        %v513 = vpop.f32.mrb[0].mxu0
        %514 = vmatprep.mubr.f32.mxu0 0.0
        %515 = vmatmul.mubr.f32.gmra.mrb[0].mxu0 %v406
        %v516 = vpop.f32.mrb[0].mxu0
        %v517 = vadd.f32 %v438, %v516
        %v518 = vpop.f32.mrb[0].mxu0
        %519 = vmatprep.mubr.f32.mxu0 0.0
        %520 = vmatmul.mubr.f32.gmra.mrb[0].mxu0 %v407
        %v521 = vpop.f32.mrb[0].mxu0
        %v522 = vadd.f32 %v438, %v521
        %v523 = vpop.f32.mrb[0].mxu0
        %524 = vmatprep.mubr.f32.mxu0 0.0
        %525 = vmatmul.mubr.f32.gmra.mrb[0].mxu0 %v408
        %v526 = vpop.f32.mrb[0].mxu0
        %v527 = vadd.f32 %v438, %v526
        %v528 = vpop.f32.mrb[0].mxu0
        %529 = vmatprep.mubr.f32.mxu0 0.0
        %530 = vmatmul.mubr.f32.gmra.mrb[0].mxu0 %v409
        %v531 = vpop.f32.mrb[0].mxu0
        %v532 = vadd.f32 %v438, %v531
        %v533 = vpop.f32.mrb[0].mxu0
        %534 = vmatprep.mubr.f32.mxu0 0.0
        %535 = vmatmul.mubr.f32.gmra.mrb[0].mxu0 %v410
        %v536 = vpop.f32.mrb[0].mxu0
        %v537 = vadd.f32 %v438, %v536
        %v538 = vpop.f32.mrb[0].mxu0
        %539 = vmatprep.mubr.f32.mxu0 0.0
        %540 = vmatmul.mubr.f32.gmra.mrb[0].mxu0 %v411
        %v541 = vpop.f32.mrb[0].mxu0
        %v542 = vadd.f32 %v438, %v541
        %v543 = vpop.f32.mrb[0].mxu0
        %544 = vmatprep.mubr.f32.mxu0 0.0
        %545 = vmatmul.mubr.f32.gmra.mrb[0].mxu0 %v412
        %v546 = vpop.f32.mrb[0].mxu0
        %v547 = vadd.f32 %v438, %v546
        %v548 = vpop.f32.mrb[0].mxu0
        %549 = vmatprep.mubr.f32.mxu0 0.0
        %550 = vmatmul.mubr.f32.gmra.mrb[0].mxu0 %v413
        %v551 = vpop.f32.mrb[0].mxu0
        %v552 = vadd.f32 %v438, %v551
        %v553 = vpop.f32.mrb[0].mxu0
        %554 = vmatprep.mubr.f32.mxu0 0.0
        %555 = vmatmul.mubr.f32.gmra.mrb[0].mxu0 %v414
        %v556 = vpop.f32.mrb[0].mxu0
        %v557 = vadd.f32 %v438, %v556
        %v558 = vpop.f32.mrb[0].mxu0
        %559 = vmatprep.mubr.f32.mxu0 0.0
        %560 = vmatmul.mubr.f32.gmra.mrb[0].mxu0 %v415
        %v561 = vpop.f32.mrb[0].mxu0
        %v562 = vadd.f32 %v438, %v561
        %v563 = vpop.f32.mrb[0].mxu0
        %564 = vmatprep.mubr.f32.mxu0 0.0
        %565 = vmatmul.mubr.f32.gmra.mrb[0].mxu0 %v416
        %v566 = vpop.f32.mrb[0].mxu0
        %v567 = vadd.f32 %v438, %v566
        %v568 = vpop.f32.mrb[0].mxu0
        %569 = vdwg.mxu0
        %v570 = vpack.c.bf16 %v512, %v507
        %v571 = vpack.c.bf16 %v522, %v517
        %v572 = vpack.c.bf16 %v532, %v527
        %v573 = vpack.c.bf16 %v542, %v537
        %v574 = vpack.c.bf16 %v552, %v547
        %v575 = vpack.c.bf16 %v562, %v557
        %v576 = vpack.c.bf16 %v567, %v567
        %v584 = vunpack.c.l.b16 %v570
        %v585 = vunpack.c.h.b16 %v570
        %v586 = vunpack.c.l.b16 %v571
        %v587 = vunpack.c.h.b16 %v571
        %v588 = vunpack.c.l.b16 %v572
        %v589 = vunpack.c.h.b16 %v572
        %v590 = vunpack.c.l.b16 %v573
        %v591 = vunpack.c.h.b16 %v573
        %v592 = vunpack.c.l.b16 %v574
        %v593 = vunpack.c.h.b16 %v574
        %v594 = vunpack.c.l.b16 %v575
        %v595 = vunpack.c.h.b16 %v575
        %v596 = vunpack.c.l.b16 %v576
        %v597 = vpack.c.b16 %v584, %v584
        %v598 = vpack.c.b16 %v585, %v585
        %v599 = vpack.c.b16 %v586, %v586
        %v600 = vpack.c.b16 %v587, %v587
        %v601 = vpack.c.b16 %v588, %v588
        %v602 = vpack.c.b16 %v589, %v589
        %v603 = vpack.c.b16 %v590, %v590
        %v604 = vpack.c.b16 %v591, %v591
        %v605 = vpack.c.b16 %v592, %v592
        %v606 = vpack.c.b16 %v593, %v593
        %v607 = vpack.c.b16 %v594, %v594
        %v608 = vpack.c.b16 %v595, %v595
        %v609 = vpack.c.b16 %v596, %v596
        %623 = vst [vmem:[%s230] sm:$0xf] %v597
        %624 = vst [vmem:[%s230 + $0x4] sm:$0xf] %v598
        %625 = vst [vmem:[%s230 + $0x8] sm:$0xf] %v599
        %626 = vst [vmem:[%s230 + $0xc] sm:$0xf] %v600
        %627 = vst [vmem:[%s230 + $0x10] sm:$0xf] %v601
        %628 = vst [vmem:[%s230 + $0x14] sm:$0xf] %v602
        %629 = vst [vmem:[%s230 + $0x18] sm:$0xf] %v603
        %630 = vst [vmem:[%s230 + $0x1c] sm:$0xf] %v604
        %631 = vst [vmem:[%s230 + $0x20] sm:$0xf] %v605
        %632 = vst [vmem:[%s230 + $0x24] sm:$0xf] %v606
        %633 = vst [vmem:[%s230 + $0x28] sm:$0xf] %v607
        %634 = vst [vmem:[%s230 + $0x2c] sm:$0xf] %v608
        %635 = vst [vmem:[%s230 + $0x30] sm:$0xf] %v609
        %s636 = sand.u32 %s137, 1
        %s637 = scalar_lea.sflag [#allocation3], %s636
        %s638 = sand.u32 %s137, 1
        %s639 = smul.addr %s638, 52
        %s640 = scalar_lea.vmem [#allocation2], %s639
        // Predicated region
        $region41: #{neuralnet_forward_padded.1} parent=39 // pred_check
          %p641 = pneg %p147
        $region42: #{neuralnet_forward_padded.1} parent=39 // pred_check_branch
          %643 = sbr.rel (%p641) target = $region44
        $region43: #{neuralnet_forward_padded.1} parent=39 // pred_region
          %s644 = smul.u32 13, %s19
          %s645 = ssub.s32 25, %s644
          %p646 = scmp.lt.s32.totalorder %s645, 13
          %s647 = scalar_select %p646, %s645, 13
          %s648 = smul.u32 64, %s647
          %s650 = ssub.s32 832, %s648
          %651 = vsyncadd %s637, %s650
          %p652 = scmp.ne.s32.totalorder 0, %s648
          %s653 = smul.addr %s644, 64
          %s654 = scalar_lea.hbm %s5, %s653
          %s655 = smul.u32 4, %s647
          %s656 = sshll.u32 %s640, 4
          %s657 = int_to_ptr.vmem [resolvable:$true] %s656
          %s658 = sshll.u32 %s655, 4
          %662 = dma.vmem_to_hbm [thread:$0]  (%p652), %s657, %s658, %s654, %s637, 64, 64, 4
        $region44: #{neuralnet_forward_padded.1} parent=39 // pred_fallthru
          _
      $region40: #{neuralnet_forward_padded.1} parent=5 // pred_fallthru
        _
      %p663 = scmp.le.s32.totalorder 2, %s14
      // Predicated region
      $region45: #{neuralnet_forward_padded.1} parent=5 // pred_check
        %p664 = pneg %p663
      $region46: #{neuralnet_forward_padded.1} parent=5 // pred_check_branch
        %666 = sbr.rel (%p664) target = $region48
      $region47: #{neuralnet_forward_padded.1} parent=5 // pred_region
        %s667 = ssub.s32 %s14, 2
        // Predicated region
        $region49: #{neuralnet_forward_padded.1} parent=47 // pred_check
          %p668 = pneg %p153
        $region50: #{neuralnet_forward_padded.1} parent=47 // pred_check_branch
          %670 = sbr.rel (%p668) target = $region52
        $region51: #{neuralnet_forward_padded.1} parent=47 // pred_region
          %s671 = sand.u32 %s138, 1
          %s672 = scalar_lea.sflag [#allocation3], %s671
          %s673 = sand.u32 %s138, 1
          %s674 = smul.addr %s673, 52
          %s675 = scalar_lea.vmem [#allocation2], %s674
          %676 = dma.done %s672, 832
        $region52: #{neuralnet_forward_padded.1} parent=47 // pred_fallthru
          _
      $region48: #{neuralnet_forward_padded.1} parent=5 // pred_fallthru
        _
    $region6: #{neuralnet_forward_padded.1} parent=1 // loop_footer
      %s18 = sadd.s32 1, %s14
    $region7: #{neuralnet_forward_padded.1} parent=1 // loop_footer_branch
      %13 = sbr.rel target = $region3
    $region8: #{neuralnet_forward_padded.1} parent=1 // loop_exit
      _
    %677 = vsyncpa [#allocation3], 1
    %s678 = scalar_lea.sflag [#allocation3], 1
    %679 = vsyncpa %s678, 1

</llo_original>
